<compile_context>
chip_gen: v6e
topology: v6e:2x2x1
jax: 0.10.0
libtpu: 0.0.40
codegen_flags: <defaults>
</compile_context>

<pallas_src>
import functools

import jax
import jax.numpy as jnp
from jax.experimental import pallas as pl
from jax.experimental.pallas import tpu as pltpu


def _addnorm_kernel(*refs, eps, d, has_mask):
    if has_mask:
        x_ref, sub_ref, mask_ref, gamma_ref, beta_ref, o_ref = refs
    else:
        x_ref, sub_ref, gamma_ref, beta_ref, o_ref = refs
        mask_ref = None

    x = x_ref[...].astype(jnp.float32)
    s = sub_ref[...].astype(jnp.float32)
    if has_mask:
        # mask holds 0.0 or 1/(1-p): dropout drop + survivor rescale in one multiply.
        s = s * mask_ref[...]

    z = x + s

    # Per-row statistics over the (full, unpadded) feature axis.
    mean = jnp.sum(z, axis=-1, keepdims=True) * (1.0 / d)
    diff = z - mean
    # torch.Tensor.std() default: unbiased estimator (ddof = 1); guard D == 1.
    var = jnp.sum(diff * diff, axis=-1, keepdims=True) * (1.0 / max(d - 1, 1))
    std = jnp.sqrt(var)

    # Literal reference math (operator-precedence quirk): x_hat = z - mean/(std+eps).
    x_hat = z - mean / (std + eps)
    o_ref[...] = (gamma_ref[...] * x_hat + beta_ref[...]).astype(o_ref.dtype)


def _pick_tile_rows(rows, d, in_isz, out_isz, vmem_budget, has_mask):
    # Double-buffered x/sub(/mask)/out blocks plus live f32 temporaries
    # (z, diff, x_hat, casted inputs; +mask/where results when training).
    n_in_bytes = 2 * in_isz + (4 if has_mask else 0)
    per_row = d * (2 * (n_in_bytes + out_isz) + (7 if has_mask else 5) * 4)
    tile = int((vmem_budget * 3 // 4) // max(per_row, 1))
    tile = max(8, min(tile, 512))          # per-step overhead amortization saturates ~512 rows
    if tile >= rows:
        return rows                        # one block spanning the full row extent (always legal)
    return max(8, (tile // 32) * 32)       # multiple of 32: sublane packing for f32/bf16/int8


def add_and_norm(x, sublayer_output, gamma, beta,
                 *, p=0.2, eps=1e-9, training=False, seed=0, tile_rows=None):
    """x, sublayer_output: (B, S, D); gamma, beta: (D,). Output dtype == x.dtype."""
    B, S, D = x.shape
    rows = B * S

    in_isz = jnp.dtype(x.dtype).itemsize
    out_isz = in_isz
    try:
        vmem_budget = int(pltpu.get_tpu_info().vmem_capacity_bytes)
    except Exception:
        vmem_budget = 64 << 20
    vmem_budget = min(vmem_budget, 64 << 20)   # per-TensorCore clamp (v7x safety)

    has_mask = bool(training) and float(p) > 0.0

    if tile_rows is None:
        tile_rows = _pick_tile_rows(rows, D, in_isz, out_isz, vmem_budget, has_mask)

    # Free, contiguous reshapes (no HBM pass); no padding, no output slicing.
    x2 = x.reshape(rows, D)
    s2 = sublayer_output.reshape(rows, D)
    g2 = gamma.reshape(1, D).astype(jnp.float32)
    b2 = beta.reshape(1, D).astype(jnp.float32)

    row_spec = pl.BlockSpec((tile_rows, D), lambda i: (i, 0))
    param_spec = pl.BlockSpec((1, D), lambda i: (0, 0))   # resident; no re-DMA per step

    inputs = [x2, s2]
    in_specs = [row_spec, row_spec]
    if has_mask:
        # TODO(synk): jax.random stream, not torch's RNG (no bit-match).
        keep = jax.random.bernoulli(jax.random.PRNGKey(int(seed)), 1.0 - float(p), (rows, D))
        mask = keep.astype(jnp.float32) * (1.0 / (1.0 - float(p)))
        inputs.append(mask)
        in_specs.append(row_spec)
    inputs += [g2, b2]
    in_specs += [param_spec, param_spec]

    kernel = functools.partial(_addnorm_kernel, eps=float(eps), d=D, has_mask=has_mask)

    # Scoped-VMEM limit: double-buffered I/O blocks + f32 temps + slack, capped
    # at ~80% of the per-TC budget so compiler-internal scratch keeps headroom.
    n_in_bytes = 2 * in_isz + (4 if has_mask else 0)
    io_bytes = 2 * tile_rows * D * (n_in_bytes + out_isz)
    tmp_bytes = (7 if has_mask else 5) * 4 * tile_rows * D
    vmem_limit = int(min(vmem_budget * 4 // 5,
                         max(32 << 20, io_bytes + tmp_bytes + (4 << 20))))

    out = pl.pallas_call(
        kernel,
        out_shape=jax.ShapeDtypeStruct((rows, D), x.dtype),
        grid=(pl.cdiv(rows, tile_rows),),      # partial last block: OOB writes dropped
        in_specs=in_specs,
        out_specs=row_spec,
        compiler_params=pltpu.CompilerParams(
            dimension_semantics=("parallel",),  # rows are independent; shards across TCs
            vmem_limit_bytes=vmem_limit),
    )(*inputs)

    return out.reshape(B, S, D)


def _reference(x, sub, gamma, beta, eps=1e-9):
    """Pure-JAX reference of the same (literal) math, eval-mode dropout."""
    z = (x + sub).astype(jnp.float32)
    d = z.shape[-1]
    mean = jnp.mean(z, axis=-1, keepdims=True)
    var = jnp.sum((z - mean) ** 2, axis=-1, keepdims=True) / max(d - 1, 1)
    std = jnp.sqrt(var)
    x_hat = z - mean / (std + eps)
    return gamma.astype(jnp.float32) * x_hat + beta.astype(jnp.float32)


if __name__ == "__main__":
    # Small shapes consistent with the module: batch=2, seq=8, hidden=32.
    B, S, D = 2, 8, 32
    key = jax.random.PRNGKey(0)
    kx, ks = jax.random.split(key)
    x = jax.random.normal(kx, (B, S, D), dtype=jnp.float32)
    sub = jax.random.normal(ks, (B, S, D), dtype=jnp.float32)

    # Deterministic parameter init (matches nn.Parameter(ones/zeros) in __init__).
    gamma = jnp.ones((D,), dtype=jnp.float32)
    beta = jnp.zeros((D,), dtype=jnp.float32)

    out = jax.block_until_ready(
        add_and_norm(x, sub, gamma, beta, p=0.2, eps=1e-9, training=False))
    ref = _reference(x, sub, gamma, beta)
    assert out.shape == (B, S, D)
    assert jnp.allclose(out, ref, atol=1e-5, rtol=1e-5), "mismatch vs reference (f32)"

    # Odd shapes: exercises a partial last row-block (150 rows, tile 64) and a
    # non-128-multiple feature axis (D=96, full-D block, no padding pass).
    B2, S2, D2 = 3, 50, 96
    k1, k2 = jax.random.split(jax.random.PRNGKey(1))
    x2 = jax.random.normal(k1, (B2, S2, D2), dtype=jnp.float32)
    s2 = jax.random.normal(k2, (B2, S2, D2), dtype=jnp.float32)
    g2 = jnp.ones((D2,), dtype=jnp.float32)
    b2 = jnp.zeros((D2,), dtype=jnp.float32)
    out2 = jax.block_until_ready(
        add_and_norm(x2, s2, g2, b2, training=False, tile_rows=64))
    ref2 = _reference(x2, s2, g2, b2)
    assert out2.shape == (B2, S2, D2)
    assert jnp.allclose(out2, ref2, atol=1e-5, rtol=1e-5), "mismatch vs reference (ragged)"

    # bf16 I/O path (compute stays f32 in-kernel, bf16 written out).
    xb = x.astype(jnp.bfloat16)
    sb = sub.astype(jnp.bfloat16)
    out_b = jax.block_until_ready(add_and_norm(xb, sb, gamma, beta, training=False))
    ref_b = _reference(xb.astype(jnp.float32), sb.astype(jnp.float32), gamma, beta)
    assert out_b.dtype == jnp.bfloat16
    assert jnp.allclose(out_b.astype(jnp.float32), ref_b, atol=5e-2, rtol=5e-2), \
        "mismatch vs reference (bf16)"

    # Training-mode dropout: mask built in the wrapper, applied in-kernel.
    out_t = jax.block_until_ready(
        add_and_norm(x, sub, gamma, beta, p=0.2, training=True, seed=123))
    assert out_t.shape == (B, S, D)
    assert bool(jnp.all(jnp.isfinite(out_t)))
    # Cross-check against the reference fed the identically-masked sublayer output.
    keep_t = jax.random.bernoulli(jax.random.PRNGKey(123), 0.8, (B * S, D))
    sub_dropped = (sub.reshape(B * S, D)
                   * keep_t.astype(jnp.float32) * (1.0 / 0.8)).reshape(B, S, D)
    ref_t = _reference(x, sub_dropped, gamma, beta)
    assert jnp.allclose(out_t, ref_t, atol=1e-5, rtol=1e-5), "mismatch vs reference (dropout)"

    print("KERNEL_OK")
</pallas_src>

<mosaic_0001>
module attributes {stable_mosaic.version = 11 : i64} {
  func.func @_addnorm_kernel(%arg0: i32, %arg1: memref<16x32xf32, #tpu.memory_space<vmem>>, %arg2: memref<16x32xf32, #tpu.memory_space<vmem>>, %arg3: memref<1x32xf32, #tpu.memory_space<vmem>>, %arg4: memref<1x32xf32, #tpu.memory_space<vmem>>, %arg5: memref<16x32xf32, #tpu.memory_space<vmem>>) attributes {dimension_semantics = [#tpu.dimension_semantics<parallel>], iteration_bounds = array<i64: 1>, scalar_prefetch = 0 : i64, scratch_operands = 0 : i64, tpu.core_type = #tpu.core_type<tc>, window_params = [{transform_indices = @transform_0, window_bounds = array<i64: 16, 32>}, {transform_indices = @transform_1, window_bounds = array<i64: 16, 32>}, {pipeline_mode = #tpu.pipeline_mode<synchronous>, transform_indices = @transform_2, window_bounds = array<i64: 1, 32>}, {pipeline_mode = #tpu.pipeline_mode<synchronous>, transform_indices = @transform_3, window_bounds = array<i64: 1, 32>}, {transform_indices = @transform_4, window_bounds = array<i64: 16, 32>}]} {
    %c0 = arith.constant 0 : index
    %c0_0 = arith.constant 0 : index
    %0 = vector.load %arg1[%c0, %c0_0] : memref<16x32xf32, #tpu.memory_space<vmem>>, vector<16x32xf32>
    %c0_1 = arith.constant 0 : index
    %c0_2 = arith.constant 0 : index
    %1 = vector.load %arg2[%c0_1, %c0_2] : memref<16x32xf32, #tpu.memory_space<vmem>>, vector<16x32xf32>
    %2 = arith.addf %0, %1 : vector<16x32xf32>
    %cst = arith.constant dense<0.000000e+00> : vector<16xf32>
    %3 = vector.multi_reduction <add>, %2, %cst [1] : vector<16x32xf32> to vector<16xf32>
    %4 = vector.shape_cast %3 : vector<16xf32> to vector<16x1xf32>
    %cst_3 = arith.constant 3.125000e-02 : f32
    %5 = vector.broadcast %cst_3 : f32 to vector<16x1xf32>
    %6 = arith.mulf %4, %5 : vector<16x1xf32>
    %7 = vector.broadcast %6 : vector<16x1xf32> to vector<16x32xf32>
    %8 = arith.subf %2, %7 : vector<16x32xf32>
    %9 = arith.mulf %8, %8 : vector<16x32xf32>
    %cst_4 = arith.constant dense<0.000000e+00> : vector<16xf32>
    %10 = vector.multi_reduction <add>, %9, %cst_4 [1] : vector<16x32xf32> to vector<16xf32>
    %11 = vector.shape_cast %10 : vector<16xf32> to vector<16x1xf32>
    %cst_5 = arith.constant 0.0322580636 : f32
    %12 = vector.broadcast %cst_5 : f32 to vector<16x1xf32>
    %13 = arith.mulf %11, %12 : vector<16x1xf32>
    %14 = math.sqrt %13 : vector<16x1xf32>
    %cst_6 = arith.constant 9.99999971E-10 : f32
    %15 = vector.broadcast %cst_6 : f32 to vector<16x1xf32>
    %16 = arith.addf %14, %15 : vector<16x1xf32>
    %17 = arith.divf %6, %16 : vector<16x1xf32>
    %18 = vector.broadcast %17 : vector<16x1xf32> to vector<16x32xf32>
    %19 = arith.subf %2, %18 : vector<16x32xf32>
    %c0_7 = arith.constant 0 : index
    %c0_8 = arith.constant 0 : index
    %20 = vector.load %arg3[%c0_7, %c0_8] : memref<1x32xf32, #tpu.memory_space<vmem>>, vector<1x32xf32>
    %21 = vector.broadcast %20 : vector<1x32xf32> to vector<16x32xf32>
    %22 = arith.mulf %21, %19 : vector<16x32xf32>
    %c0_9 = arith.constant 0 : index
    %c0_10 = arith.constant 0 : index
    %23 = vector.load %arg4[%c0_9, %c0_10] : memref<1x32xf32, #tpu.memory_space<vmem>>, vector<1x32xf32>
    %24 = vector.broadcast %23 : vector<1x32xf32> to vector<16x32xf32>
    %25 = arith.addf %22, %24 : vector<16x32xf32>
    %c0_11 = arith.constant 0 : index
    %c0_12 = arith.constant 0 : index
    %26 = vector.load %arg5[%c0_11, %c0_12] : memref<16x32xf32, #tpu.memory_space<vmem>>, vector<16x32xf32>
    tpu.vector_store %arg5[%c0_11, %c0_12], %25 {strides = array<i32>} : memref<16x32xf32, #tpu.memory_space<vmem>>, vector<16x32xf32>,
    return
  }
  func.func @transform_0(%arg0: i32) -> (i32, i32) {
    %c0_i32 = arith.constant 0 : i32
    %c0_i32_0 = arith.constant 0 : i32
    return %arg0, %c0_i32 : i32, i32
  }
  func.func @transform_1(%arg0: i32) -> (i32, i32) {
    %c0_i32 = arith.constant 0 : i32
    %c0_i32_0 = arith.constant 0 : i32
    return %arg0, %c0_i32 : i32, i32
  }
  func.func @transform_2(%arg0: i32) -> (i32, i32) {
    %c0_i32 = arith.constant 0 : i32
    %c0_i32_0 = arith.constant 0 : i32
    %c0_i32_1 = arith.constant 0 : i32
    return %c0_i32, %c0_i32_0 : i32, i32
  }
  func.func @transform_3(%arg0: i32) -> (i32, i32) {
    %c0_i32 = arith.constant 0 : i32
    %c0_i32_0 = arith.constant 0 : i32
    %c0_i32_1 = arith.constant 0 : i32
    return %c0_i32, %c0_i32_0 : i32, i32
  }
  func.func @transform_4(%arg0: i32) -> (i32, i32) {
    %c0_i32 = arith.constant 0 : i32
    %c0_i32_0 = arith.constant 0 : i32
    return %arg0, %c0_i32 : i32, i32
  }
}

</mosaic_0001>

<llo_original>
// kernel: tpu_custom_call.1
$region0: #{tpu_custom_call.1}
  #allocation0 [shape = 'u32[]', space=smem, size = 0x4, offset = 0x4, fixed_abs, tag = 'smem constant byte address 0x4 - core index']
  #allocation1 [shape = 'u32[144,128]{1,0:T(1,128)}', space=vmem, size = 0x12000, scoped, tag = 'internal scratch']
  %s0 = inlined_call_operand.hbm [shape: f32[16,32], index: 0, kind: input, shape index: {}]
  %s1 = inlined_call_operand.hbm [shape: f32[16,32], index: 1, kind: input, shape index: {}]
  %s2 = inlined_call_operand.vmem [shape: f32[1,32], index: 2, kind: input, shape index: {}]
  %s3 = inlined_call_operand.vmem [shape: f32[1,32], index: 3, kind: input, shape index: {}]
  %s4 = inlined_call_operand.hbm [shape: f32[16,32], index: 4, kind: output, shape index: {}]
  %s5 = sld [smem:[#allocation0]]
  $region34: #{tpu_custom_call.1} parent=0
    _
  %s7 = ssub.s32 1, %s5
  %s8 = scalar_select 0, %s7, %s5
  $region1: #{tpu_custom_call.1} parent=0
    #allocation2 [shape = 'u8[8192]{0}', space=vmem, size = 0x2000, scoped, tag = 'input window, operand 0, single buffered']
    #allocation3 [shape = 's32[1]{0}', space=sflag, size = 0x4, scoped, tag = 'scoped memory for tpu_custom_call.1']
    #allocation4 [shape = 's32[1]{0}', space=sflag, size = 0x4, scoped, tag = 'scoped memory for tpu_custom_call.1']
    #allocation5 [shape = 'u8[8192]{0}', space=vmem, size = 0x2000, scoped, tag = 'input window, operand 1, single buffered']
    #allocation6 [shape = 's32[1]{0}', space=sflag, size = 0x4, scoped, tag = 'scoped memory for tpu_custom_call.1']
    #allocation7 [shape = 'u8[8192]{0}', space=vmem, size = 0x2000, scoped, tag = 'output window, operand 0, single buffered']
    %9 = vsyncpa [#allocation3], 0
    %10 = vsyncpa [#allocation6], 0
    %11 = vsyncpa [#allocation4], 0
    // Predicated region
    $region2: #{tpu_custom_call.1} parent=1 // pred_check
      _
    $region3: #{tpu_custom_call.1} parent=1 // pred_check_branch
      %13 = sbr.rel (0) target = $region5
    $region4: #{tpu_custom_call.1} parent=1 // pred_region
      %s15 = ssub.s32 256, 256
      %16 = vsyncadd [#allocation3], %s15
      %s17 = sshll.u32 [#allocation2], 4
      %s18 = int_to_ptr.vmem [resolvable:$true] %s17
      %23 = dma.hbm_to_vmem [thread:$0]  %s0, 256, %s18, [#allocation3], 128, 128, 8
    $region5: #{tpu_custom_call.1} parent=1 // pred_fallthru
      _
    // Predicated region
    $region6: #{tpu_custom_call.1} parent=1 // pred_check
      _
    $region7: #{tpu_custom_call.1} parent=1 // pred_check_branch
      %25 = sbr.rel (0) target = $region9
    $region8: #{tpu_custom_call.1} parent=1 // pred_region
      %s27 = ssub.s32 256, 256
      %28 = vsyncadd [#allocation6], %s27
      %s29 = sshll.u32 [#allocation5], 4
      %s30 = int_to_ptr.vmem [resolvable:$true] %s29
      %35 = dma.hbm_to_vmem [thread:$0]  %s1, 256, %s30, [#allocation6], 128, 128, 8
    $region9: #{tpu_custom_call.1} parent=1 // pred_fallthru
      _
    // Predicated region
    $region10: #{tpu_custom_call.1} parent=1 // pred_check
      _
    $region11: #{tpu_custom_call.1} parent=1 // pred_check_branch
      %37 = sbr.rel (0) target = $region13
    $region12: #{tpu_custom_call.1} parent=1 // pred_region
      _
    $region13: #{tpu_custom_call.1} parent=1 // pred_fallthru
      _
    // Predicated region
    $region14: #{tpu_custom_call.1} parent=1 // pred_check
      _
    $region15: #{tpu_custom_call.1} parent=1 // pred_check_branch
      %39 = sbr.rel (0) target = $region17
    $region16: #{tpu_custom_call.1} parent=1 // pred_region
      _
    $region17: #{tpu_custom_call.1} parent=1 // pred_fallthru
      _
    // Predicated region
    $region18: #{tpu_custom_call.1} parent=1 // pred_check
      _
    $region19: #{tpu_custom_call.1} parent=1 // pred_check_branch
      %41 = sbr.rel (0) target = $region21
    $region20: #{tpu_custom_call.1} parent=1 // pred_region
      %42 = dma.done [#allocation3], 256
    $region21: #{tpu_custom_call.1} parent=1 // pred_fallthru
      _
    // Predicated region
    $region22: #{tpu_custom_call.1} parent=1 // pred_check
      _
    $region23: #{tpu_custom_call.1} parent=1 // pred_check_branch
      %44 = sbr.rel (0) target = $region25
    $region24: #{tpu_custom_call.1} parent=1 // pred_region
      %45 = dma.done [#allocation6], 256
    $region25: #{tpu_custom_call.1} parent=1 // pred_fallthru
      _
    %v46 = vld [vmem:[#allocation2] sm:$0xff]
    %v47 = vld [vmem:[#allocation2 + $0x8] sm:$0xff]
    %v48 = vld [vmem:[#allocation5] sm:$0xff]
    %v49 = vld [vmem:[#allocation5 + $0x8] sm:$0xff]
    %v50 = vadd.f32 %v46, %v48
    %v51 = vadd.f32 %v47, %v49
    %vm52 = vcmask 261120
    %v53 = vsel %vm52, %v50, 0.0
    %54 = vadd.xlane.f32.xlu0 %v53
    %v55 = vpop.xlane.xlu0 %54
    %v56 = vsel %vm52, %v51, 0.0
    %57 = vadd.xlane.f32.xlu0 %v56
    %v58 = vpop.xlane.xlu0 %57
    %v59 = vmul.f32 %v55, 0.03125
    %v60 = vmul.f32 %v58, 0.03125
    %v61 = vsub.f32 %v50, %v59
    %v62 = vsub.f32 %v51, %v60
    %v63 = vmul.f32 %v61, %v61
    %v64 = vmul.f32 %v62, %v62
    %v65 = vsel %vm52, %v63, 0.0
    %66 = vadd.xlane.f32.xlu0 %v65
    %v67 = vpop.xlane.xlu0 %66
    %v68 = vsel %vm52, %v64, 0.0
    %69 = vadd.xlane.f32.xlu0 %v68
    %v70 = vpop.xlane.xlu0 %69
    %v71 = vmul.f32 %v67, 0.032258064
    %v72 = vmul.f32 %v70, 0.032258064
    %v73 = vrsqrt.pop %v71
    %v74 = vmul.f32 %v71, %v73
    %vm75 = vcmp.eq.f32.partialorder %v71, inf
    %v76 = vsel %vm75, %v71, %v74
    %vm77 = vcmp.eq.f32.partialorder %v71, 0.0
    %v78 = vand.u32 %v71, 2147483648
    %v79 = vsel %vm77, %v78, %v76
    %v80 = vrsqrt.pop %v72
    %v81 = vmul.f32 %v72, %v80
    %vm82 = vcmp.eq.f32.partialorder %v72, inf
    %v83 = vsel %vm82, %v72, %v81
    %vm84 = vcmp.eq.f32.partialorder %v72, 0.0
    %v85 = vand.u32 %v72, 2147483648
    %v86 = vsel %vm84, %v85, %v83
    %v87 = vadd.f32 %v79, 1e-09
    %v88 = vadd.f32 %v86, 1e-09
    %v89 = vrcp.pop %v87
    %v90 = vmul.f32 %v59, %v89
    %v91 = vrcp.pop %v88
    %v92 = vmul.f32 %v60, %v91
    %v93 = vsub.f32 %v50, %v90
    %v94 = vsub.f32 %v51, %v92
    %v95 = vld [vmem:[%s2] sm:$0x1]
    %v97 = vlaneseq
    %v98 = vshrl.u32 %v97, 7
    %v99 = vsub.s32 0, %v98
    %v100 = vrot.slane %v95, %v99
    %v102 = vmul.f32 %v100, %v93
    %v103 = vmul.f32 %v100, %v94
    %v104 = vld [vmem:[%s3] sm:$0x1]
    %v106 = vlaneseq
    %v107 = vshrl.u32 %v106, 7
    %v108 = vsub.s32 0, %v107
    %v109 = vrot.slane %v104, %v108
    %v111 = vadd.f32 %v102, %v109
    %v112 = vadd.f32 %v103, %v109
    %113 = vst.msk [vmem:[#allocation7] sm:$0xff] %vm52, %v111
    %114 = vst.msk [vmem:[#allocation7 + $0x8] sm:$0xff] %vm52, %v112
    // Predicated region
    $region26: #{tpu_custom_call.1} parent=1 // pred_check
      _
    $region27: #{tpu_custom_call.1} parent=1 // pred_check_branch
      %116 = sbr.rel (0) target = $region29
    $region28: #{tpu_custom_call.1} parent=1 // pred_region
      %s118 = ssub.s32 256, 256
      %119 = vsyncadd [#allocation4], %s118
      %s120 = sshll.u32 [#allocation7], 4
      %s121 = int_to_ptr.vmem [resolvable:$true] %s120
      %126 = dma.vmem_to_hbm [thread:$0]  %s121, 256, %s4, [#allocation4], 128, 128, 8
    $region29: #{tpu_custom_call.1} parent=1 // pred_fallthru
      _
    // Predicated region
    $region30: #{tpu_custom_call.1} parent=1 // pred_check
      _
    $region31: #{tpu_custom_call.1} parent=1 // pred_check_branch
      %128 = sbr.rel (0) target = $region33
    $region32: #{tpu_custom_call.1} parent=1 // pred_region
      %129 = dma.done [#allocation4], 256
    $region33: #{tpu_custom_call.1} parent=1 // pred_fallthru
      _
    %130 = vsyncpa [#allocation3], 1
    %131 = vsyncpa [#allocation6], 1
    %132 = vsyncpa [#allocation4], 1

</llo_original>
